<compile_context>
chip_gen: v7x
topology: tpu7x:2x2x1
jax: 0.10.0
libtpu: 0.0.40
codegen_flags: <defaults>
</compile_context>

<pallas_src>
import jax
import jax.numpy as jnp
from jax.experimental import pallas as pl
from jax.experimental.pallas import tpu as pltpu

LANE = 128  # TPU lane width; packed slabs are zero-padded to this in the last dim


def _leaky_relu(x, negative_slope=1e-4):
    # matches F.leaky_relu(x, negative_slope=0.0001) used by the PyTorch module
    return jnp.where(x >= 0, x, negative_slope * x)


def _make_kernel(in_ch: int, latent: int, out_ch: int):
    L, C = latent, out_ch

    def kernel(x_ref, eps_ref, w_ref, b_ref, out_ref):
        x = x_ref[...]        # [B, in_ch]
        eps = eps_ref[...]    # [B, L]
        b = b_ref[...]        # [8, 128] packed biases (one vreg)

        # ---- encoder: hidden_1 + leaky_relu ----------------------------------
        # Padded weight cols / bias lanes are zero, so lanes >= hidden stay 0.
        h = jnp.dot(x, w_ref[0, :in_ch, :],
                    preferred_element_type=jnp.float32) + b[0:1, :]
        h = _leaky_relu(h)

        # ---- fused z_mean | z_log_var projection (one MXU pass) --------------
        # lanes [0, L) = z_mean, lanes [L, 2L) = z_log_var, remaining lanes = 0.
        zmv = jnp.dot(h, w_ref[1], preferred_element_type=jnp.float32) + b[1:2, :]
        z_mean = zmv[:, 0:L]
        z_log_var = zmv[:, L:2 * L]

        # ---- reparameterize: z = mu + eps * exp(log_var / 2) -----------------
        enc = z_mean + eps * jnp.exp(0.5 * z_log_var)          # [B, L]

        # ---- decoder ----------------------------------------------------------
        d = jnp.dot(enc, w_ref[2, :L, :],
                    preferred_element_type=jnp.float32) + b[2:3, :]
        d = _leaky_relu(d)
        d = jnp.dot(d, w_ref[3], preferred_element_type=jnp.float32) + b[3:4, :]
        # sigmoid = 1 / (1 + exp(-d)): exp + approx reciprocal both on the EUP slot
        dec = pl.reciprocal(1.0 + jnp.exp(-d), approx=True)    # [B, 128]

        # ---- single lane-dense output slab: [mean | log_var | enc | dec | 0] --
        out_ref[...] = zmv                       # lanes [0,2L) valid, rest already 0
        out_ref[:, 2 * L:3 * L] = enc
        out_ref[:, 3 * L:3 * L + C] = dec[:, 0:C]

    return kernel


def pack_params(params):
    """Pack the 10 Linear weights/biases into two 128-lane-padded VMEM slabs.

    Weights are stored as [in_dim, out_dim] (y = x @ W + b, i.e. torch W.T).
    Returns dict with:
      w: [4, 128, 128] f32  slot 0: hidden_1, slot 1: z_mean|z_log_var (fused),
                            slot 2: linear_3, slot 3: linear_4 (zero padded)
      b: [8, 128]      f32  rows 0..3 = b1, bm|bv, b3, b4 (zero padded)
      dims: (in_channels, hidden_dim, latent_dim, out_channels)
    """
    w1, b1 = params["w1"], params["b1"]
    wm, bm = params["wm"], params["bm"]
    wv, bv = params["wv"], params["bv"]
    w3, b3 = params["w3"], params["b3"]
    w4, b4 = params["w4"], params["b4"]

    in_ch, hidden = w1.shape
    latent = wm.shape[1]
    out_ch = w4.shape[1]
    assert max(in_ch, hidden, 2 * latent, out_ch) <= LANE, "dims must fit in 128 lanes"
    assert 3 * latent + out_ch <= LANE, "packed output slab must fit in 128 lanes"

    def pad_w(w):
        out = jnp.zeros((LANE, LANE), jnp.float32)
        return out.at[: w.shape[0], : w.shape[1]].set(w.astype(jnp.float32))

    wmv = jnp.concatenate([wm, wv], axis=1)                        # [hidden, 2*latent]
    w_slab = jnp.stack([pad_w(w1), pad_w(wmv), pad_w(w3), pad_w(w4)])  # [4,128,128]

    b_slab = jnp.zeros((8, LANE), jnp.float32)
    b_slab = b_slab.at[0, :hidden].set(b1.reshape(-1))
    b_slab = b_slab.at[1, :latent].set(bm.reshape(-1))
    b_slab = b_slab.at[1, latent:2 * latent].set(bv.reshape(-1))
    b_slab = b_slab.at[2, :hidden].set(b3.reshape(-1))
    b_slab = b_slab.at[3, :out_ch].set(b4.reshape(-1))

    return {"w": w_slab, "b": b_slab, "dims": (in_ch, hidden, latent, out_ch)}


def vae_forward(features, eps, packed):
    """features: [B, in_channels] f32; eps: [B, latent_dim] f32 (the torch.randn draw)."""
    in_ch, hidden, latent, out_ch = packed["dims"]
    B = features.shape[0]
    L = latent

    vmem = pl.BlockSpec(memory_space=pltpu.MemorySpace.VMEM)
    out = pl.pallas_call(
        _make_kernel(in_ch, latent, out_ch),
        out_shape=jax.ShapeDtypeStruct((B, LANE), jnp.float32),
        in_specs=[vmem, vmem, vmem, vmem],
        out_specs=vmem,
    )(features.astype(jnp.float32), eps.astype(jnp.float32), packed["w"], packed["b"])

    z_mean = out[:, 0:L]
    z_log_var = out[:, L:2 * L]
    encoded = out[:, 2 * L:3 * L]
    decoded = out[:, 3 * L:3 * L + out_ch]
    return z_mean, z_log_var, encoded, decoded


def init_params(key, in_channels, out_channels, latent_dim, hidden_dim):
    """Deterministic synthetic parameters. Weights stored as [in_dim, out_dim]."""
    ks = jax.random.split(key, 10)

    def lin(kw, kb, fan_in, fan_out):
        # mimic torch.nn.Linear default init: U(-1/sqrt(fan_in), 1/sqrt(fan_in))
        bound = 1.0 / jnp.sqrt(jnp.float32(fan_in))
        w = jax.random.uniform(kw, (fan_in, fan_out), jnp.float32, -bound, bound)
        b = jax.random.uniform(kb, (1, fan_out), jnp.float32, -bound, bound)
        return w, b

    w1, b1 = lin(ks[0], ks[1], in_channels, hidden_dim)
    wm, bm = lin(ks[2], ks[3], hidden_dim, latent_dim)
    wv, bv = lin(ks[4], ks[5], hidden_dim, latent_dim)
    w3, b3 = lin(ks[6], ks[7], latent_dim, hidden_dim)
    w4, b4 = lin(ks[8], ks[9], hidden_dim, out_channels)
    return dict(w1=w1, b1=b1, wm=wm, bm=bm, wv=wv, bv=bv,
                w3=w3, b3=b3, w4=w4, b4=b4)


def vae_forward_ref(features, eps, p):
    """Pure-JAX reference for correctness check (unpacked params)."""
    h = _leaky_relu(features @ p["w1"] + p["b1"])
    zm = h @ p["wm"] + p["bm"]
    zv = h @ p["wv"] + p["bv"]
    enc = zm + eps * jnp.exp(zv * 0.5)
    d = _leaky_relu(enc @ p["w3"] + p["b3"])
    dec = jax.nn.sigmoid(d @ p["w4"] + p["b4"])
    return zm, zv, enc, dec


if __name__ == "__main__":
    # Small shapes implied by the module's forward (features: [B, in_channels]).
    B, in_channels, out_channels, latent_dim, hidden_dim = 8, 32, 32, 16, 64

    key = jax.random.PRNGKey(0)
    k_x, k_eps, k_p = jax.random.split(key, 3)

    features = jax.random.normal(k_x, (B, in_channels), dtype=jnp.float32)
    # eps corresponds to torch.randn(z_mu.size(0), z_mu.size(1)) in reparameterize,
    # supplied deterministically from outside the kernel.
    eps = jax.random.normal(k_eps, (B, latent_dim), dtype=jnp.float32)
    params = init_params(k_p, in_channels, out_channels, latent_dim, hidden_dim)
    packed = pack_params(params)   # host-side packing, done once

    z_mean, z_log_var, encoded, decoded = vae_forward(features, eps, packed)
    jax.block_until_ready((z_mean, z_log_var, encoded, decoded))

    # sanity check vs pure-JAX reference
    rm, rv, renc, rdec = vae_forward_ref(features, eps, params)
    assert jnp.allclose(z_mean, rm, atol=1e-4), "z_mean mismatch"
    assert jnp.allclose(z_log_var, rv, atol=1e-4), "z_log_var mismatch"
    assert jnp.allclose(encoded, renc, atol=1e-4), "encoded mismatch"
    # decoded uses the EUP approx reciprocal -> slightly looser tolerance
    assert jnp.allclose(decoded, rdec, atol=2e-3), "decoded mismatch"

    print("KERNEL_OK")
</pallas_src>

<mosaic_0001>
module attributes {stable_mosaic.version = 11 : i64} {
  func.func @kernel(%arg0: memref<8x32xf32, #tpu.memory_space<vmem>>, %arg1: memref<8x16xf32, #tpu.memory_space<vmem>>, %arg2: memref<4x128x128xf32, #tpu.memory_space<vmem>>, %arg3: memref<8x128xf32, #tpu.memory_space<vmem>>, %arg4: memref<8x128xf32, #tpu.memory_space<vmem>>) attributes {dimension_semantics = [], scalar_prefetch = 0 : i64, scratch_operands = 0 : i64, tpu.core_type = #tpu.core_type<tc>} {
    %c0 = arith.constant 0 : index
    %c0_0 = arith.constant 0 : index
    %0 = vector.load %arg0[%c0, %c0_0] : memref<8x32xf32, #tpu.memory_space<vmem>>, vector<8x32xf32>
    %c0_1 = arith.constant 0 : index
    %c0_2 = arith.constant 0 : index
    %1 = vector.load %arg1[%c0_1, %c0_2] : memref<8x16xf32, #tpu.memory_space<vmem>>, vector<8x16xf32>
    %c0_3 = arith.constant 0 : index
    %c0_4 = arith.constant 0 : index
    %2 = vector.load %arg3[%c0_3, %c0_4] : memref<8x128xf32, #tpu.memory_space<vmem>>, vector<8x128xf32>
    %c0_5 = arith.constant 0 : index
    %c0_6 = arith.constant 0 : index
    %c0_7 = arith.constant 0 : index
    %3 = vector.load %arg2[%c0_5, %c0_6, %c0_7] : memref<4x128x128xf32, #tpu.memory_space<vmem>>, vector<1x32x128xf32>
    %4 = vector.shape_cast %3 : vector<1x32x128xf32> to vector<32x128xf32>
    %cst = arith.constant dense<0.000000e+00> : vector<8x128xf32>
    %5 = tpu.matmul %0, %4, %cst {dimension_numbers = #tpu.dot_dimension_numbers<[1], [0], [0], [1], [0, 0, 1, 1], [], []>} : vector<8x32xf32>, vector<32x128xf32>, vector<8x128xf32> -> vector<8x128xf32>
    %6 = vector.extract_strided_slice %2 {offsets = [0, 0], sizes = [1, 128], strides = [1, 1]} : vector<8x128xf32> to vector<1x128xf32>
    %7 = vector.broadcast %6 : vector<1x128xf32> to vector<8x128xf32>
    %8 = arith.addf %5, %7 : vector<8x128xf32>
    %cst_8 = arith.constant 0.000000e+00 : f32
    %9 = vector.broadcast %cst_8 : f32 to vector<8x128xf32>
    %10 = arith.cmpf oge, %8, %9 : vector<8x128xf32>
    %cst_9 = arith.constant 9.99999974E-5 : f32
    %11 = vector.broadcast %cst_9 : f32 to vector<8x128xf32>
    %12 = arith.mulf %11, %8 : vector<8x128xf32>
    %13 = arith.select %10, %8, %12 : vector<8x128xi1>, vector<8x128xf32>
    %c1 = arith.constant 1 : index
    %c0_10 = arith.constant 0 : index
    %c0_11 = arith.constant 0 : index
    %14 = vector.load %arg2[%c1, %c0_10, %c0_11] : memref<4x128x128xf32, #tpu.memory_space<vmem>>, vector<1x128x128xf32>
    %15 = vector.shape_cast %14 : vector<1x128x128xf32> to vector<128x128xf32>
    %cst_12 = arith.constant dense<0.000000e+00> : vector<8x128xf32>
    %16 = tpu.matmul %13, %15, %cst_12 {dimension_numbers = #tpu.dot_dimension_numbers<[1], [0], [0], [1], [0, 0, 1, 1], [], []>} : vector<8x128xf32>, vector<128x128xf32>, vector<8x128xf32> -> vector<8x128xf32>
    %17 = vector.extract_strided_slice %2 {offsets = [1, 0], sizes = [1, 128], strides = [1, 1]} : vector<8x128xf32> to vector<1x128xf32>
    %18 = vector.broadcast %17 : vector<1x128xf32> to vector<8x128xf32>
    %19 = arith.addf %16, %18 : vector<8x128xf32>
    %20 = vector.extract_strided_slice %19 {offsets = [0, 0], sizes = [8, 16], strides = [1, 1]} : vector<8x128xf32> to vector<8x16xf32>
    %21 = vector.extract_strided_slice %19 {offsets = [0, 16], sizes = [8, 16], strides = [1, 1]} : vector<8x128xf32> to vector<8x16xf32>
    %cst_13 = arith.constant 5.000000e-01 : f32
    %22 = vector.broadcast %cst_13 : f32 to vector<8x16xf32>
    %23 = arith.mulf %22, %21 : vector<8x16xf32>
    %24 = math.exp %23 : vector<8x16xf32>
    %25 = arith.mulf %1, %24 : vector<8x16xf32>
    %26 = arith.addf %20, %25 : vector<8x16xf32>
    %c2 = arith.constant 2 : index
    %c0_14 = arith.constant 0 : index
    %c0_15 = arith.constant 0 : index
    %27 = vector.load %arg2[%c2, %c0_14, %c0_15] : memref<4x128x128xf32, #tpu.memory_space<vmem>>, vector<1x16x128xf32>
    %28 = vector.shape_cast %27 : vector<1x16x128xf32> to vector<16x128xf32>
    %cst_16 = arith.constant dense<0.000000e+00> : vector<8x128xf32>
    %29 = tpu.matmul %26, %28, %cst_16 {dimension_numbers = #tpu.dot_dimension_numbers<[1], [0], [0], [1], [0, 0, 1, 1], [], []>} : vector<8x16xf32>, vector<16x128xf32>, vector<8x128xf32> -> vector<8x128xf32>
    %30 = vector.extract_strided_slice %2 {offsets = [2, 0], sizes = [1, 128], strides = [1, 1]} : vector<8x128xf32> to vector<1x128xf32>
    %31 = vector.broadcast %30 : vector<1x128xf32> to vector<8x128xf32>
    %32 = arith.addf %29, %31 : vector<8x128xf32>
    %cst_17 = arith.constant 0.000000e+00 : f32
    %33 = vector.broadcast %cst_17 : f32 to vector<8x128xf32>
    %34 = arith.cmpf oge, %32, %33 : vector<8x128xf32>
    %cst_18 = arith.constant 9.99999974E-5 : f32
    %35 = vector.broadcast %cst_18 : f32 to vector<8x128xf32>
    %36 = arith.mulf %35, %32 : vector<8x128xf32>
    %37 = arith.select %34, %32, %36 : vector<8x128xi1>, vector<8x128xf32>
    %c3 = arith.constant 3 : index
    %c0_19 = arith.constant 0 : index
    %c0_20 = arith.constant 0 : index
    %38 = vector.load %arg2[%c3, %c0_19, %c0_20] : memref<4x128x128xf32, #tpu.memory_space<vmem>>, vector<1x128x128xf32>
    %39 = vector.shape_cast %38 : vector<1x128x128xf32> to vector<128x128xf32>
    %cst_21 = arith.constant dense<0.000000e+00> : vector<8x128xf32>
    %40 = tpu.matmul %37, %39, %cst_21 {dimension_numbers = #tpu.dot_dimension_numbers<[1], [0], [0], [1], [0, 0, 1, 1], [], []>} : vector<8x128xf32>, vector<128x128xf32>, vector<8x128xf32> -> vector<8x128xf32>
    %41 = vector.extract_strided_slice %2 {offsets = [3, 0], sizes = [1, 128], strides = [1, 1]} : vector<8x128xf32> to vector<1x128xf32>
    %42 = vector.broadcast %41 : vector<1x128xf32> to vector<8x128xf32>
    %43 = arith.addf %40, %42 : vector<8x128xf32>
    %cst_22 = arith.constant 0.000000e+00 : f32
    %44 = vector.broadcast %cst_22 : f32 to vector<8x128xf32>
    %45 = arith.subf %44, %43 : vector<8x128xf32>
    %46 = math.exp %45 : vector<8x128xf32>
    %cst_23 = arith.constant 1.000000e+00 : f32
    %47 = vector.broadcast %cst_23 : f32 to vector<8x128xf32>
    %48 = arith.addf %47, %46 : vector<8x128xf32>
    %49 = tpu.reciprocal %48 {approx = true} : vector<8x128xf32> -> vector<8x128xf32>
    %c0_24 = arith.constant 0 : index
    %c0_25 = arith.constant 0 : index
    %50 = vector.load %arg4[%c0_24, %c0_25] : memref<8x128xf32, #tpu.memory_space<vmem>>, vector<8x128xf32>
    tpu.vector_store %arg4[%c0_24, %c0_25], %19 {strides = array<i32>} : memref<8x128xf32, #tpu.memory_space<vmem>>, vector<8x128xf32>,
    %c0_26 = arith.constant 0 : index
    %c32 = arith.constant 32 : index
    %51 = vector.load %arg4[%c0_26, %c32] : memref<8x128xf32, #tpu.memory_space<vmem>>, vector<8x16xf32>
    tpu.vector_store %arg4[%c0_26, %c32], %26 {strides = array<i32>} : memref<8x128xf32, #tpu.memory_space<vmem>>, vector<8x16xf32>,
    %52 = vector.extract_strided_slice %49 {offsets = [0, 0], sizes = [8, 32], strides = [1, 1]} : vector<8x128xf32> to vector<8x32xf32>
    %c0_27 = arith.constant 0 : index
    %c48 = arith.constant 48 : index
    %53 = vector.load %arg4[%c0_27, %c48] : memref<8x128xf32, #tpu.memory_space<vmem>>, vector<8x32xf32>
    tpu.vector_store %arg4[%c0_27, %c48], %52 {strides = array<i32>} : memref<8x128xf32, #tpu.memory_space<vmem>>, vector<8x32xf32>,
    return
  }
}

</mosaic_0001>

<llo_original>
// kernel: tpu_custom_call.1
$region0: #{tpu_custom_call.1}
  #allocation0 [shape = 'u32[]', space=smem, size = 0x4, offset = 0x4, fixed_abs, tag = 'smem constant byte address 0x4 - core index']
  #allocation1 [shape = 'u32[144,128]{1,0:T(1,128)}', space=vmem, size = 0x12000, scoped, tag = 'internal scratch']
  %s0 = inlined_call_operand.hbm [shape: f32[8,32], index: 0, kind: input, shape index: {}]
  %s1 = inlined_call_operand.hbm [shape: f32[8,16], index: 1, kind: input, shape index: {}]
  %s2 = inlined_call_operand.hbm [shape: f32[4,128,128], index: 2, kind: input, shape index: {}]
  %s3 = inlined_call_operand.vmem [shape: f32[8,128], index: 3, kind: input, shape index: {}]
  %s4 = inlined_call_operand.hbm [shape: f32[8,128], index: 4, kind: output, shape index: {}]
  %s5 = sld [smem:[#allocation0]]
  $region38: #{tpu_custom_call.1} parent=0
    _
  %s7 = ssub.s32 1, %s5
  %s8 = scalar_select 0, %s7, %s5
  $region1: #{tpu_custom_call.1} parent=0
    #allocation2 [shape = 'u8[4096]{0}', space=vmem, size = 0x1000, scoped, tag = 'input window, operand 0, single buffered']
    #allocation3 [shape = 's32[1]{0}', space=sflag, size = 0x4, scoped, tag = 'scoped memory for tpu_custom_call.1']
    #allocation4 [shape = 's32[1]{0}', space=sflag, size = 0x4, scoped, tag = 'scoped memory for tpu_custom_call.1']
    #allocation5 [shape = 'u8[4096]{0}', space=vmem, size = 0x1000, scoped, tag = 'input window, operand 1, single buffered']
    #allocation6 [shape = 's32[1]{0}', space=sflag, size = 0x4, scoped, tag = 'scoped memory for tpu_custom_call.1']
    #allocation7 [shape = 'u8[262144]{0}', space=vmem, size = 0x40000, scoped, tag = 'input window, operand 2, single buffered']
    #allocation8 [shape = 'u8[4096]{0}', space=vmem, size = 0x1000, scoped, tag = 'output window, operand 0, single buffered']
    %9 = vsyncpa [#allocation3], 0
    %10 = vsyncpa [#allocation6], 0
    %11 = vsyncpa [#allocation4], 0
    // Predicated region
    $region2: #{tpu_custom_call.1} parent=1 // pred_check
      _
    $region3: #{tpu_custom_call.1} parent=1 // pred_check_branch
      %13 = sbr.rel (0) target = $region5
    $region4: #{tpu_custom_call.1} parent=1 // pred_region
      %s15 = ssub.s32 128, 128
      %16 = vsyncadd [#allocation3], %s15
      %s18 = sshll.u32 [#allocation2], 4
      %s19 = int_to_ptr.vmem [resolvable:$true] %s18
      %21 = dma.hbm_to_vmem [thread:$0]  %s0, 128, %s19, [#allocation3]
    $region5: #{tpu_custom_call.1} parent=1 // pred_fallthru
      _
    // Predicated region
    $region6: #{tpu_custom_call.1} parent=1 // pred_check
      _
    $region7: #{tpu_custom_call.1} parent=1 // pred_check_branch
      %23 = sbr.rel (0) target = $region9
    $region8: #{tpu_custom_call.1} parent=1 // pred_region
      %s25 = ssub.s32 128, 128
      %26 = vsyncadd [#allocation6], %s25
      %s28 = sshll.u32 [#allocation5], 4
      %s29 = int_to_ptr.vmem [resolvable:$true] %s28
      %31 = dma.hbm_to_vmem [thread:$0]  %s1, 128, %s29, [#allocation6]
    $region9: #{tpu_custom_call.1} parent=1 // pred_fallthru
      _
    // Predicated region
    $region10: #{tpu_custom_call.1} parent=1 // pred_check
      _
    $region11: #{tpu_custom_call.1} parent=1 // pred_check_branch
      %33 = sbr.rel (0) target = $region13
    $region12: #{tpu_custom_call.1} parent=1 // pred_region
      %s35 = ssub.s32 8192, 8192
      %36 = vsyncadd [#allocation6], %s35
      %s37 = sshll.u32 [#allocation7], 4
      %s38 = int_to_ptr.vmem [resolvable:$true] %s37
      %43 = dma.hbm_to_vmem [thread:$0]  %s2, 8192, %s38, [#allocation6], 128, 128, 8
    $region13: #{tpu_custom_call.1} parent=1 // pred_fallthru
      _
    // Predicated region
    $region14: #{tpu_custom_call.1} parent=1 // pred_check
      _
    $region15: #{tpu_custom_call.1} parent=1 // pred_check_branch
      %45 = sbr.rel (0) target = $region17
    $region16: #{tpu_custom_call.1} parent=1 // pred_region
      _
    $region17: #{tpu_custom_call.1} parent=1 // pred_fallthru
      _
    // Predicated region
    $region18: #{tpu_custom_call.1} parent=1 // pred_check
      _
    $region19: #{tpu_custom_call.1} parent=1 // pred_check_branch
      %47 = sbr.rel (0) target = $region21
    $region20: #{tpu_custom_call.1} parent=1 // pred_region
      %48 = dma.done [#allocation3], 128
    $region21: #{tpu_custom_call.1} parent=1 // pred_fallthru
      _
    // Predicated region
    $region22: #{tpu_custom_call.1} parent=1 // pred_check
      _
    $region23: #{tpu_custom_call.1} parent=1 // pred_check_branch
      %50 = sbr.rel (0) target = $region25
    $region24: #{tpu_custom_call.1} parent=1 // pred_region
      %51 = dma.done [#allocation6], 128
    $region25: #{tpu_custom_call.1} parent=1 // pred_fallthru
      _
    // Predicated region
    $region26: #{tpu_custom_call.1} parent=1 // pred_check
      _
    $region27: #{tpu_custom_call.1} parent=1 // pred_check_branch
      %53 = sbr.rel (0) target = $region29
    $region28: #{tpu_custom_call.1} parent=1 // pred_region
      %54 = dma.done [#allocation6], 8192
    $region29: #{tpu_custom_call.1} parent=1 // pred_fallthru
      _
    %v55 = vld [vmem:[#allocation2] sm:$0xff]
    %v56 = vld [vmem:[#allocation5] sm:$0xff]
    %v57 = vld [vmem:[%s3] sm:$0xff]
    %v58 = vld [vmem:[#allocation7] sm:$0xff]
    %v59 = vld [vmem:[#allocation7 + $0x8] sm:$0xff]
    %v60 = vld [vmem:[#allocation7 + $0x10] sm:$0xff]
    %v61 = vld [vmem:[#allocation7 + $0x18] sm:$0xff]
    %v62 = vlaneseq
    %v63 = vshrl.u32 %v62, 7
    %v64 = vsub.s32 0, %v63
    %v65 = vrot.slane %v57, %v64
    %vm66 = vcmask 261120
    %v68 = vsel %vm66, %v55, 0
    %70 = vmatprep.subr.mxu0 0.0
    %71 = vmatpush1.msra.mxu0 %v58
    %72 = vmatprep.subr.mxu0 0.0
    %73 = vmatpush1.msra.mxu0 %v59
    %74 = vmatprep.subr.mxu0 0.0
    %75 = vmatpush1.msra.mxu0 %v60
    %76 = vmatprep.subr.mxu0 0.0
    %77 = vmatpush1.msra.mxu0 %v61
    %78 = vmatprep.subr.mxu0 0.0
    %79 = vmatpush1.msra.mxu0 0.0
    %80 = vmatprep.subr.mxu0 0.0
    %81 = vmatpush1.msra.mxu0 0.0
    %82 = vmatprep.subr.mxu0 0.0
    %83 = vmatpush1.msra.mxu0 0.0
    %84 = vmatprep.subr.mxu0 0.0
    %85 = vmatpush1.msra.mxu0 0.0
    %86 = vmatprep.subr.mxu0 0.0
    %87 = vmatpush1.msra.mxu0 0.0
    %88 = vmatprep.subr.mxu0 0.0
    %89 = vmatpush1.msra.mxu0 0.0
    %90 = vmatprep.subr.mxu0 0.0
    %91 = vmatpush1.msra.mxu0 0.0
    %92 = vmatprep.subr.mxu0 0.0
    %93 = vmatpush1.msra.mxu0 0.0
    %94 = vmatprep.subr.mxu0 0.0
    %95 = vmatpush1.msra.mxu0 0.0
    %96 = vmatprep.subr.mxu0 0.0
    %97 = vmatpush1.msra.mxu0 0.0
    %98 = vmatprep.subr.mxu0 0.0
    %99 = vmatpush1.msra.mxu0 0.0
    %100 = vmatprep.subr.mxu0 0.0
    %101 = vmatpush1.msra.mxu0 0.0
    %102 = vmatprep.subr.mxu0 0.0
    %103 = vmatpush1.msra.mxu0 0.0
    %104 = vmatprep.subr.mxu0 0.0
    %105 = vmatpush1.msra.mxu0 0.0
    %106 = vmatprep.subr.mxu0 0.0
    %107 = vmatpush1.msra.mxu0 0.0
    %108 = vmatprep.subr.mxu0 0.0
    %109 = vmatpush1.msra.mxu0 0.0
    %110 = vmatprep.subr.mxu0 0.0
    %111 = vmatpush1.msra.mxu0 0.0
    %112 = vmatprep.subr.mxu0 0.0
    %113 = vmatpush1.msra.mxu0 0.0
    %114 = vmatprep.subr.mxu0 0.0
    %115 = vmatpush1.msra.mxu0 0.0
    %116 = vmatprep.subr.mxu0 0.0
    %117 = vmatpush1.msra.mxu0 0.0
    %118 = vmatprep.subr.mxu0 0.0
    %119 = vmatpush1.msra.mxu0 0.0
    %120 = vmatprep.subr.mxu0 0.0
    %121 = vmatpush1.msra.mxu0 0.0
    %122 = vmatprep.subr.mxu0 0.0
    %123 = vmatpush1.msra.mxu0 0.0
    %124 = vmatprep.subr.mxu0 0.0
    %125 = vmatpush1.msra.mxu0 0.0
    %126 = vmatprep.subr.mxu0 0.0
    %127 = vmatpush1.msra.mxu0 0.0
    %128 = vmatprep.subr.mxu0 0.0
    %129 = vmatpush1.msra.mxu0 0.0
    %130 = vmatprep.subr.mxu0 0.0
    %131 = vmatpush1.msra.mxu0 0.0
    %132 = vmatprep.subr.mxu0 0.0
    %133 = vmatpush1.msra.mxu0 0.0
    %134 = vmatprep.mubr.f32.mxu0 0.0
    %135 = vmatmul.mubr.f32.gmra.mrb[0].mxu0 %v68
    %v136 = vpop.f32.mrb[0].mxu0
    %v137 = vadd.f32 %v65, %v136
    %v138 = vpop.f32.mrb[0].mxu0
    %139 = vdwg.mxu0
    %vm140 = vcmp.ge.f32.partialorder %v137, 0.0
    %v141 = vmul.f32 %v137, 0.0001
    %v142 = vsel %vm140, %v137, %v141
    %s143 = scalar_lea.vmem [#allocation7], 128
    %v144 = vld [vmem:[%s143] sm:$0xff]
    %v145 = vld [vmem:[%s143 + $0x8] sm:$0xff]
    %v146 = vld [vmem:[%s143 + $0x10] sm:$0xff]
    %v147 = vld [vmem:[%s143 + $0x18] sm:$0xff]
    %v148 = vld [vmem:[%s143 + $0x20] sm:$0xff]
    %v149 = vld [vmem:[%s143 + $0x28] sm:$0xff]
    %v150 = vld [vmem:[%s143 + $0x30] sm:$0xff]
    %v151 = vld [vmem:[%s143 + $0x38] sm:$0xff]
    %v152 = vld [vmem:[%s143 + $0x40] sm:$0xff]
    %v153 = vld [vmem:[%s143 + $0x48] sm:$0xff]
    %v154 = vld [vmem:[%s143 + $0x50] sm:$0xff]
    %v155 = vld [vmem:[%s143 + $0x58] sm:$0xff]
    %v156 = vld [vmem:[%s143 + $0x60] sm:$0xff]
    %v157 = vld [vmem:[%s143 + $0x68] sm:$0xff]
    %v158 = vld [vmem:[%s143 + $0x70] sm:$0xff]
    %v159 = vld [vmem:[%s143 + $0x78] sm:$0xff]
    %v160 = vlaneseq
    %v161 = vshrl.u32 %v160, 7
    %v162 = vsub.s32 1, %v161
    %v163 = vrot.slane %v57, %v162
    %164 = vmatprep.subr.mxu0 0.0
    %165 = vmatpush1.msra.mxu0 %v144
    %166 = vmatprep.subr.mxu0 0.0
    %167 = vmatpush1.msra.mxu0 %v145
    %168 = vmatprep.subr.mxu0 0.0
    %169 = vmatpush1.msra.mxu0 %v146
    %170 = vmatprep.subr.mxu0 0.0
    %171 = vmatpush1.msra.mxu0 %v147
    %172 = vmatprep.subr.mxu0 0.0
    %173 = vmatpush1.msra.mxu0 %v148
    %174 = vmatprep.subr.mxu0 0.0
    %175 = vmatpush1.msra.mxu0 %v149
    %176 = vmatprep.subr.mxu0 0.0
    %177 = vmatpush1.msra.mxu0 %v150
    %178 = vmatprep.subr.mxu0 0.0
    %179 = vmatpush1.msra.mxu0 %v151
    %180 = vmatprep.subr.mxu0 0.0
    %181 = vmatpush1.msra.mxu0 %v152
    %182 = vmatprep.subr.mxu0 0.0
    %183 = vmatpush1.msra.mxu0 %v153
    %184 = vmatprep.subr.mxu0 0.0
    %185 = vmatpush1.msra.mxu0 %v154
    %186 = vmatprep.subr.mxu0 0.0
    %187 = vmatpush1.msra.mxu0 %v155
    %188 = vmatprep.subr.mxu0 0.0
    %189 = vmatpush1.msra.mxu0 %v156
    %190 = vmatprep.subr.mxu0 0.0
    %191 = vmatpush1.msra.mxu0 %v157
    %192 = vmatprep.subr.mxu0 0.0
    %193 = vmatpush1.msra.mxu0 %v158
    %194 = vmatprep.subr.mxu0 0.0
    %195 = vmatpush1.msra.mxu0 %v159
    %196 = vmatprep.subr.mxu0 0.0
    %197 = vmatpush1.msra.mxu0 0.0
    %198 = vmatprep.subr.mxu0 0.0
    %199 = vmatpush1.msra.mxu0 0.0
    %200 = vmatprep.subr.mxu0 0.0
    %201 = vmatpush1.msra.mxu0 0.0
    %202 = vmatprep.subr.mxu0 0.0
    %203 = vmatpush1.msra.mxu0 0.0
    %204 = vmatprep.subr.mxu0 0.0
    %205 = vmatpush1.msra.mxu0 0.0
    %206 = vmatprep.subr.mxu0 0.0
    %207 = vmatpush1.msra.mxu0 0.0
    %208 = vmatprep.subr.mxu0 0.0
    %209 = vmatpush1.msra.mxu0 0.0
    %210 = vmatprep.subr.mxu0 0.0
    %211 = vmatpush1.msra.mxu0 0.0
    %212 = vmatprep.subr.mxu0 0.0
    %213 = vmatpush1.msra.mxu0 0.0
    %214 = vmatprep.subr.mxu0 0.0
    %215 = vmatpush1.msra.mxu0 0.0
    %216 = vmatprep.subr.mxu0 0.0
    %217 = vmatpush1.msra.mxu0 0.0
    %218 = vmatprep.subr.mxu0 0.0
    %219 = vmatpush1.msra.mxu0 0.0
    %220 = vmatprep.subr.mxu0 0.0
    %221 = vmatpush1.msra.mxu0 0.0
    %222 = vmatprep.subr.mxu0 0.0
    %223 = vmatpush1.msra.mxu0 0.0
    %224 = vmatprep.subr.mxu0 0.0
    %225 = vmatpush1.msra.mxu0 0.0
    %226 = vmatprep.subr.mxu0 0.0
    %227 = vmatpush1.msra.mxu0 0.0
    %228 = vmatprep.mubr.f32.mxu0 0.0
    %229 = vmatmul.mubr.f32.gmra.mrb[0].mxu0 %v142
    %v230 = vpop.f32.mrb[0].mxu0
    %v231 = vadd.f32 %v163, %v230
    %v232 = vpop.f32.mrb[0].mxu0
    %233 = vdwg.mxu0
    %v234 = vmul.f32 %v231, 0.5
    %v235 = vmul.f32 %v234, 1.442695
    %v236 = vpow.pop %v235
    %238 = vrot.lane.b32.xlu0 %v236, 112
    %v239 = vpop.permute.xlu0 %238
    %v241 = vmul.f32 %v56, %v239
    %v242 = vadd.f32 %v231, %v241
    %s243 = scalar_lea.vmem [#allocation7], 256
    %v244 = vld [vmem:[%s243] sm:$0xff]
    %v245 = vld [vmem:[%s243 + $0x8] sm:$0xff]
    %v246 = vlaneseq
    %v247 = vshrl.u32 %v246, 7
    %v248 = vsub.s32 2, %v247
    %v249 = vrot.slane %v57, %v248
    %vm250 = vcmask 130048
    %v252 = vsel %vm250, %v242, 0
    %254 = vmatprep.subr.mxu0 0.0
    %255 = vmatpush1.msra.mxu0 %v244
    %256 = vmatprep.subr.mxu0 0.0
    %257 = vmatpush1.msra.mxu0 %v245
    %258 = vmatprep.subr.mxu0 0.0
    %259 = vmatpush1.msra.mxu0 0.0
    %260 = vmatprep.subr.mxu0 0.0
    %261 = vmatpush1.msra.mxu0 0.0
    %262 = vmatprep.subr.mxu0 0.0
    %263 = vmatpush1.msra.mxu0 0.0
    %264 = vmatprep.subr.mxu0 0.0
    %265 = vmatpush1.msra.mxu0 0.0
    %266 = vmatprep.subr.mxu0 0.0
    %267 = vmatpush1.msra.mxu0 0.0
    %268 = vmatprep.subr.mxu0 0.0
    %269 = vmatpush1.msra.mxu0 0.0
    %270 = vmatprep.subr.mxu0 0.0
    %271 = vmatpush1.msra.mxu0 0.0
    %272 = vmatprep.subr.mxu0 0.0
    %273 = vmatpush1.msra.mxu0 0.0
    %274 = vmatprep.subr.mxu0 0.0
    %275 = vmatpush1.msra.mxu0 0.0
    %276 = vmatprep.subr.mxu0 0.0
    %277 = vmatpush1.msra.mxu0 0.0
    %278 = vmatprep.subr.mxu0 0.0
    %279 = vmatpush1.msra.mxu0 0.0
    %280 = vmatprep.subr.mxu0 0.0
    %281 = vmatpush1.msra.mxu0 0.0
    %282 = vmatprep.subr.mxu0 0.0
    %283 = vmatpush1.msra.mxu0 0.0
    %284 = vmatprep.subr.mxu0 0.0
    %285 = vmatpush1.msra.mxu0 0.0
    %286 = vmatprep.subr.mxu0 0.0
    %287 = vmatpush1.msra.mxu0 0.0
    %288 = vmatprep.subr.mxu0 0.0
    %289 = vmatpush1.msra.mxu0 0.0
    %290 = vmatprep.subr.mxu0 0.0
    %291 = vmatpush1.msra.mxu0 0.0
    %292 = vmatprep.subr.mxu0 0.0
    %293 = vmatpush1.msra.mxu0 0.0
    %294 = vmatprep.subr.mxu0 0.0
    %295 = vmatpush1.msra.mxu0 0.0
    %296 = vmatprep.subr.mxu0 0.0
    %297 = vmatpush1.msra.mxu0 0.0
    %298 = vmatprep.subr.mxu0 0.0
    %299 = vmatpush1.msra.mxu0 0.0
    %300 = vmatprep.subr.mxu0 0.0
    %301 = vmatpush1.msra.mxu0 0.0
    %302 = vmatprep.subr.mxu0 0.0
    %303 = vmatpush1.msra.mxu0 0.0
    %304 = vmatprep.subr.mxu0 0.0
    %305 = vmatpush1.msra.mxu0 0.0
    %306 = vmatprep.subr.mxu0 0.0
    %307 = vmatpush1.msra.mxu0 0.0
    %308 = vmatprep.subr.mxu0 0.0
    %309 = vmatpush1.msra.mxu0 0.0
    %310 = vmatprep.subr.mxu0 0.0
    %311 = vmatpush1.msra.mxu0 0.0
    %312 = vmatprep.subr.mxu0 0.0
    %313 = vmatpush1.msra.mxu0 0.0
    %314 = vmatprep.subr.mxu0 0.0
    %315 = vmatpush1.msra.mxu0 0.0
    %316 = vmatprep.subr.mxu0 0.0
    %317 = vmatpush1.msra.mxu0 0.0
    %318 = vmatprep.mubr.f32.mxu0 0.0
    %319 = vmatmul.mubr.f32.gmra.mrb[0].mxu0 %v252
    %v320 = vpop.f32.mrb[0].mxu0
    %v321 = vadd.f32 %v249, %v320
    %v322 = vpop.f32.mrb[0].mxu0
    %323 = vdwg.mxu0
    %vm324 = vcmp.ge.f32.partialorder %v321, 0.0
    %v325 = vmul.f32 %v321, 0.0001
    %v326 = vsel %vm324, %v321, %v325
    %s327 = scalar_lea.vmem [#allocation7], 384
    %v328 = vld [vmem:[%s327] sm:$0xff]
    %v329 = vld [vmem:[%s327 + $0x8] sm:$0xff]
    %v330 = vld [vmem:[%s327 + $0x10] sm:$0xff]
    %v331 = vld [vmem:[%s327 + $0x18] sm:$0xff]
    %v332 = vld [vmem:[%s327 + $0x20] sm:$0xff]
    %v333 = vld [vmem:[%s327 + $0x28] sm:$0xff]
    %v334 = vld [vmem:[%s327 + $0x30] sm:$0xff]
    %v335 = vld [vmem:[%s327 + $0x38] sm:$0xff]
    %v336 = vld [vmem:[%s327 + $0x40] sm:$0xff]
    %v337 = vld [vmem:[%s327 + $0x48] sm:$0xff]
    %v338 = vld [vmem:[%s327 + $0x50] sm:$0xff]
    %v339 = vld [vmem:[%s327 + $0x58] sm:$0xff]
    %v340 = vld [vmem:[%s327 + $0x60] sm:$0xff]
    %v341 = vld [vmem:[%s327 + $0x68] sm:$0xff]
    %v342 = vld [vmem:[%s327 + $0x70] sm:$0xff]
    %v343 = vld [vmem:[%s327 + $0x78] sm:$0xff]
    %v344 = vlaneseq
    %v345 = vshrl.u32 %v344, 7
    %v346 = vsub.s32 3, %v345
    %v347 = vrot.slane %v57, %v346
    %348 = vmatprep.subr.mxu0 0.0
    %349 = vmatpush1.msra.mxu0 %v328
    %350 = vmatprep.subr.mxu0 0.0
    %351 = vmatpush1.msra.mxu0 %v329
    %352 = vmatprep.subr.mxu0 0.0
    %353 = vmatpush1.msra.mxu0 %v330
    %354 = vmatprep.subr.mxu0 0.0
    %355 = vmatpush1.msra.mxu0 %v331
    %356 = vmatprep.subr.mxu0 0.0
    %357 = vmatpush1.msra.mxu0 %v332
    %358 = vmatprep.subr.mxu0 0.0
    %359 = vmatpush1.msra.mxu0 %v333
    %360 = vmatprep.subr.mxu0 0.0
    %361 = vmatpush1.msra.mxu0 %v334
    %362 = vmatprep.subr.mxu0 0.0
    %363 = vmatpush1.msra.mxu0 %v335
    %364 = vmatprep.subr.mxu0 0.0
    %365 = vmatpush1.msra.mxu0 %v336
    %366 = vmatprep.subr.mxu0 0.0
    %367 = vmatpush1.msra.mxu0 %v337
    %368 = vmatprep.subr.mxu0 0.0
    %369 = vmatpush1.msra.mxu0 %v338
    %370 = vmatprep.subr.mxu0 0.0
    %371 = vmatpush1.msra.mxu0 %v339
    %372 = vmatprep.subr.mxu0 0.0
    %373 = vmatpush1.msra.mxu0 %v340
    %374 = vmatprep.subr.mxu0 0.0
    %375 = vmatpush1.msra.mxu0 %v341
    %376 = vmatprep.subr.mxu0 0.0
    %377 = vmatpush1.msra.mxu0 %v342
    %378 = vmatprep.subr.mxu0 0.0
    %379 = vmatpush1.msra.mxu0 %v343
    %380 = vmatprep.subr.mxu0 0.0
    %381 = vmatpush1.msra.mxu0 0.0
    %382 = vmatprep.subr.mxu0 0.0
    %383 = vmatpush1.msra.mxu0 0.0
    %384 = vmatprep.subr.mxu0 0.0
    %385 = vmatpush1.msra.mxu0 0.0
    %386 = vmatprep.subr.mxu0 0.0
    %387 = vmatpush1.msra.mxu0 0.0
    %388 = vmatprep.subr.mxu0 0.0
    %389 = vmatpush1.msra.mxu0 0.0
    %390 = vmatprep.subr.mxu0 0.0
    %391 = vmatpush1.msra.mxu0 0.0
    %392 = vmatprep.subr.mxu0 0.0
    %393 = vmatpush1.msra.mxu0 0.0
    %394 = vmatprep.subr.mxu0 0.0
    %395 = vmatpush1.msra.mxu0 0.0
    %396 = vmatprep.subr.mxu0 0.0
    %397 = vmatpush1.msra.mxu0 0.0
    %398 = vmatprep.subr.mxu0 0.0
    %399 = vmatpush1.msra.mxu0 0.0
    %400 = vmatprep.subr.mxu0 0.0
    %401 = vmatpush1.msra.mxu0 0.0
    %402 = vmatprep.subr.mxu0 0.0
    %403 = vmatpush1.msra.mxu0 0.0
    %404 = vmatprep.subr.mxu0 0.0
    %405 = vmatpush1.msra.mxu0 0.0
    %406 = vmatprep.subr.mxu0 0.0
    %407 = vmatpush1.msra.mxu0 0.0
    %408 = vmatprep.subr.mxu0 0.0
    %409 = vmatpush1.msra.mxu0 0.0
    %410 = vmatprep.subr.mxu0 0.0
    %411 = vmatpush1.msra.mxu0 0.0
    %412 = vmatprep.mubr.f32.mxu0 0.0
    %413 = vmatmul.mubr.f32.gmra.mrb[0].mxu0 %v326
    %v414 = vpop.f32.mrb[0].mxu0
    %v415 = vadd.f32 %v347, %v414
    %v416 = vpop.f32.mrb[0].mxu0
    %417 = vdwg.mxu0
    %v418 = vsub.f32 0.0, %v415
    %v419 = vmul.f32 %v418, 1.442695
    %v420 = vpow.pop %v419
    %v421 = vadd.f32 %v420, 1.0
    %v422 = vrcp.pop %v421
    %423 = vst [vmem:[#allocation8] sm:$0xff] %v231
    %424 = vrot.lane.b32.xlu0 %v242, 32
    %v425 = vpop.permute.xlu0 %424
    %vm427 = vcmask 392448
    %428 = vst.msk [vmem:[#allocation8] sm:$0xff] %vm427, %v425
    %430 = vrot.lane.b32.xlu0 %v422, 48
    %v431 = vpop.permute.xlu0 %430
    %vm433 = vcmask 654720
    %434 = vst.msk [vmem:[#allocation8] sm:$0xff] %vm433, %v431
    // Predicated region
    $region30: #{tpu_custom_call.1} parent=1 // pred_check
      _
    $region31: #{tpu_custom_call.1} parent=1 // pred_check_branch
      %436 = sbr.rel (0) target = $region33
    $region32: #{tpu_custom_call.1} parent=1 // pred_region
      %s438 = ssub.s32 128, 128
      %439 = vsyncadd [#allocation4], %s438
      %s441 = sshll.u32 [#allocation8], 4
      %s442 = int_to_ptr.vmem [resolvable:$true] %s441
      %444 = dma.vmem_to_hbm [thread:$0]  %s442, 128, %s4, [#allocation4]
    $region33: #{tpu_custom_call.1} parent=1 // pred_fallthru
      _
    // Predicated region
    $region34: #{tpu_custom_call.1} parent=1 // pred_check
      _
    $region35: #{tpu_custom_call.1} parent=1 // pred_check_branch
      %446 = sbr.rel (0) target = $region37
    $region36: #{tpu_custom_call.1} parent=1 // pred_region
      %447 = dma.done [#allocation4], 128
    $region37: #{tpu_custom_call.1} parent=1 // pred_fallthru
      _
    %448 = vsyncpa [#allocation3], 1
    %449 = vsyncpa [#allocation6], 1
    %450 = vsyncpa [#allocation4], 1

</llo_original>
